<compile_context>
chip_gen: v7x
topology: tpu7x:2x2x1
jax: 0.10.0
libtpu: 0.0.40
codegen_flags: <defaults>
</compile_context>

<pallas_src>
import jax
import jax.numpy as jnp
from jax.experimental import pallas as pl
from jax.experimental.pallas import tpu as pltpu

T_HIST = 10
NHIDDEN = 64
IN_DIM = 4 * T_HIST + 1          # 41 (original feature dim)
FLAT_DIM = 4 * T_HIST            # 40 (raw-trajectory dim fed to the kernel)
H1A = NHIDDEN // 4               # 16
H1B = NHIDDEN // 8               # 8
H2A = NHIDDEN                    # 64
H2B = NHIDDEN // 2               # 32
LANES = 128

# Packed-slab row offsets (all 8-aligned where it matters).
R_W1, N_W1 = 0, FLAT_DIM          # (40, 128)  fused layer-1 weight (feature fold included)
R_B1 = 40                         # (1, 128)
R_W2, N_W2 = 48, LANES            # (128, 128) block-diag layer-2 weight
R_B2 = 176                        # (1, 128)
R_WH, N_WH = 184, LANES           # (128, 128) block-diag heads weight
R_BH = 312                        # (1, 128)
SLAB_ROWS = 320


def _elu(x):
    # torch.nn.ELU(alpha=1.0)
    return jnp.where(x > 0, x, jnp.exp(jnp.minimum(x, 0.0)) - 1.0)


def _elu_plus_one(x):
    # modexp(x) = elu(x) + 1
    return jnp.where(x > 0, x + 1.0, jnp.exp(jnp.minimum(x, 0.0)))


def _leaky_relu(x):
    # torch.nn.LeakyReLU default negative_slope = 0.01
    return jnp.where(x > 0, x, 0.01 * x)


# ----------------------------------------------------------------------------- kernel
def subspace_fused_kernel(x_ref, slab_ref, out_ref):
    x = x_ref[...]                                                    # (TB, 40)

    # Fused layer 1: lstm1.Linear(41,16) || lstm2.Linear(41,64)  -> (TB, 128)
    w1 = slab_ref[R_W1:R_W1 + N_W1, :]                                # (40, 128)
    b1 = slab_ref[R_B1:R_B1 + 1, :]                                   # (1, 128)
    h = jnp.dot(x, w1, preferred_element_type=jnp.float32) + b1
    lane = jax.lax.broadcasted_iota(jnp.int32, h.shape, 1)
    h = jnp.where(lane < H1A, _elu(h), _leaky_relu(h))                # ELU | LeakyReLU | 0-pad

    # Fused layer 2 (block-diagonal): Linear(16,8) ⊕ Linear(64,32)
    w2 = slab_ref[R_W2:R_W2 + N_W2, :]                                # (128, 128)
    b2 = slab_ref[R_B2:R_B2 + 1, :]
    g = jnp.dot(h, w2, preferred_element_type=jnp.float32) + b2
    g = jnp.where(lane < H1B, _elu(g), _leaky_relu(g))

    # Fused heads (block-diagonal): out_encoder_sv0 ⊕ out_encoder_gauss
    wh = slab_ref[R_WH:R_WH + N_WH, :]                                # (128, 128)
    bh = slab_ref[R_BH:R_BH + 1, :]
    o = jnp.dot(g, wh, preferred_element_type=jnp.float32) + bh       # (TB, 128)

    # lanes 0:2 -> sv0 (identity), lanes 2:4 -> modexp(0.1 * gauss); rest is padding.
    out_ref[...] = jnp.where(lane < 2, o, _elu_plus_one(o * 0.1))


# ----------------------------------------------------------------------------- packing
def init_params(key):
    """Deterministic PyTorch-Linear-style init: U(-1/sqrt(fan_in), 1/sqrt(fan_in)).
    Weights stored as (in, out), i.e. y = x @ W + b."""
    def lin(k, fan_in, fan_out):
        kw, kb = jax.random.split(k)
        bound = 1.0 / float(fan_in) ** 0.5
        w = jax.random.uniform(kw, (fan_in, fan_out), jnp.float32, -bound, bound)
        b = jax.random.uniform(kb, (1, fan_out), jnp.float32, -bound, bound)
        return w, b

    ks = jax.random.split(key, 6)
    p = {}
    p["w1a"], p["b1a"] = lin(ks[0], IN_DIM, H1A)
    p["w1b"], p["b1b"] = lin(ks[1], H1A, H1B)
    p["w2a"], p["b2a"] = lin(ks[2], IN_DIM, H2A)
    p["w2b"], p["b2b"] = lin(ks[3], H2A, H2B)
    p["wsv"], p["bsv"] = lin(ks[4], H1B, 2)
    p["wg"],  p["bg"]  = lin(ks[5], H2B, 2)
    return p


def pack_params(p):
    """Pack all parameters into one (320, 128) f32 slab, fusing branches and folding
    the feature construction (x - ref / append ref) into the layer-1 weights.

    The original feature is linear in the raw trajectory:
        feat[4t+c] = x[t,c] - r * [c in {0,2}],  feat[40] = r,  r = x[T-1, 2] = x_flat[38]
    so  feat @ W = x_flat @ W[:40] + x_flat[38] * (W[40] - sum_{k%4 in {0,2}} W[k]).
    """
    # Fused layer-1 weight/bias: columns [0:16) = lstm1 branch, [16:80) = lstm2 branch.
    w1 = jnp.concatenate([p["w1a"], p["w2a"]], axis=1)                # (41, 80)
    b1 = jnp.concatenate([p["b1a"], p["b2a"]], axis=1)                # (1, 80)
    k = jnp.arange(FLAT_DIM)
    m = ((k % 4 == 0) | (k % 4 == 2)).astype(jnp.float32)             # (40,)
    corr = w1[FLAT_DIM] - (m[:, None] * w1[:FLAT_DIM]).sum(axis=0)    # (80,)
    w1_eff = w1[:FLAT_DIM].at[4 * (T_HIST - 1) + 2].add(corr)         # (40, 80)

    # Block-diagonal layer-2 weight: [0:16,0:8] = w1b, [16:80,8:40] = w2b, zeros elsewhere.
    w2 = jnp.zeros((LANES, LANES), jnp.float32)
    w2 = w2.at[0:H1A, 0:H1B].set(p["w1b"])
    w2 = w2.at[H1A:H1A + H2A, H1B:H1B + H2B].set(p["w2b"])
    b2 = jnp.zeros((1, LANES), jnp.float32)
    b2 = b2.at[0, 0:H1B].set(p["b1b"][0]).at[0, H1B:H1B + H2B].set(p["b2b"][0])

    # Block-diagonal heads: [0:8,0:2] = wsv, [8:40,2:4] = wg.
    wh = jnp.zeros((LANES, LANES), jnp.float32)
    wh = wh.at[0:H1B, 0:2].set(p["wsv"])
    wh = wh.at[H1B:H1B + H2B, 2:4].set(p["wg"])
    bh = jnp.zeros((1, LANES), jnp.float32)
    bh = bh.at[0, 0:2].set(p["bsv"][0]).at[0, 2:4].set(p["bg"][0])

    slab = jnp.zeros((SLAB_ROWS, LANES), jnp.float32)
    slab = slab.at[R_W1:R_W1 + N_W1, 0:80].set(w1_eff)
    slab = slab.at[R_B1:R_B1 + 1, 0:80].set(b1)
    slab = slab.at[R_W2:R_W2 + N_W2, :].set(w2)
    slab = slab.at[R_B2:R_B2 + 1, :].set(b2)
    slab = slab.at[R_WH:R_WH + N_WH, :].set(wh)
    slab = slab.at[R_BH:R_BH + 1, :].set(bh)
    return slab


# ----------------------------------------------------------------------------- wrappers
def _pallas_forward(xflat, slab, tb):
    """xflat: (Bp, 40) with Bp % tb == 0. Returns (Bp, 128)."""
    bp = xflat.shape[0]
    grid = (bp // tb,)
    flops = 2 * bp * (FLAT_DIM * LANES + LANES * LANES + LANES * LANES)
    bytes_accessed = 4 * (SLAB_ROWS * LANES + bp * FLAT_DIM + bp * LANES)
    return pl.pallas_call(
        subspace_fused_kernel,
        out_shape=jax.ShapeDtypeStruct((bp, LANES), jnp.float32),
        grid_spec=pltpu.PrefetchScalarGridSpec(
            num_scalar_prefetch=0,
            grid=grid,
            in_specs=[
                pl.BlockSpec((tb, FLAT_DIM), lambda i: (i, 0)),
                pl.BlockSpec((SLAB_ROWS, LANES), lambda i: (0, 0)),
            ],
            out_specs=pl.BlockSpec((tb, LANES), lambda i: (i, 0)),
        ),
        compiler_params=pltpu.CompilerParams(
            dimension_semantics=("parallel",)),   # both v7x TensorCores take half the batch
        cost_estimate=pl.CostEstimate(
            flops=flops, transcendentals=3 * bp * LANES,
            bytes_accessed=bytes_accessed),
    )(xflat, slab)


@jax.jit
def subspace_predictor_forward_batched(xs, slab):
    """xs: (B, T, 4) trajectories (T >= T_HIST), slab: packed params.
    Returns (sv0 (B,2), modexp(g0) (B,), modexp(g1) (B,))."""
    b = xs.shape[0]
    xflat = xs[:, :T_HIST, :].astype(jnp.float32).reshape(b, FLAT_DIM)

    if b <= 128:
        tb = max(8, ((b + 7) // 8) * 8)
        bp = tb
    else:
        tb = 128
        bp = ((b + tb - 1) // tb) * tb
    if bp != b:
        xflat = jnp.pad(xflat, ((0, bp - b), (0, 0)))

    out = _pallas_forward(xflat, slab, tb)[:b, :4]
    return out[:, 0:2], out[:, 2], out[:, 3]


@jax.jit
def subspace_predictor_forward(x, slab):
    """Single trajectory x: (T, 4). Returns (sv0 (2,), modexp(g0), modexp(g1))."""
    sv0, m0, m1 = subspace_predictor_forward_batched(x[None], slab)
    return sv0[0], m0[0], m1[0]


# ----------------------------------------------------------------------------- reference
def _reference(x, params):
    """Pure-JAX mirror of the PyTorch forward (unfused), for sanity checking."""
    x = x[:T_HIST, :].astype(jnp.float32)
    r = x[-1:, 2:3]
    feat = jnp.concatenate(
        [x[:, 0:1] - r, x[:, 1:2], x[:, 2:3] - r, x[:, 3:4]], axis=1)
    inp = jnp.concatenate([feat.reshape(-1), r.reshape(-1)]).reshape(1, IN_DIM)
    h1 = _elu(inp @ params["w1a"] + params["b1a"])
    h1 = _elu(h1 @ params["w1b"] + params["b1b"])
    h2 = _leaky_relu(inp @ params["w2a"] + params["b2a"])
    h2 = _leaky_relu(h2 @ params["w2b"] + params["b2b"])
    sv0 = (h1 @ params["wsv"] + params["bsv"])[0]
    g = ((h2 @ params["wg"] + params["bg"])[0]) * 0.1
    return sv0, _elu_plus_one(g[0]), _elu_plus_one(g[1])


if __name__ == "__main__":
    key = jax.random.PRNGKey(0)
    kp, kx = jax.random.split(key)
    params = init_params(kp)
    slab = pack_params(params)

    # batch of past agent trajectories: (B, T, 4) with T >= T_HIST
    xs = jax.random.normal(kx, (3, 12, 4), dtype=jnp.float32)

    # batched path
    sv0_b, m0_b, m1_b = subspace_predictor_forward_batched(xs, slab)
    jax.block_until_ready((sv0_b, m0_b, m1_b))
    for i in range(xs.shape[0]):
        r_sv0, r_m0, r_m1 = _reference(xs[i], params)
        assert jnp.allclose(sv0_b[i], r_sv0, rtol=1e-4, atol=1e-5), (i, sv0_b[i], r_sv0)
        assert jnp.allclose(m0_b[i], r_m0, rtol=1e-4, atol=1e-5), (i, m0_b[i], r_m0)
        assert jnp.allclose(m1_b[i], r_m1, rtol=1e-4, atol=1e-5), (i, m1_b[i], r_m1)

    # single-trajectory path
    sv0, m0, m1 = subspace_predictor_forward(xs[0], slab)
    jax.block_until_ready((sv0, m0, m1))
    r_sv0, r_m0, r_m1 = _reference(xs[0], params)
    assert jnp.allclose(sv0, r_sv0, rtol=1e-4, atol=1e-5), (sv0, r_sv0)
    assert jnp.allclose(m0, r_m0, rtol=1e-4, atol=1e-5), (m0, r_m0)
    assert jnp.allclose(m1, r_m1, rtol=1e-4, atol=1e-5), (m1, r_m1)

    print("KERNEL_OK")
</pallas_src>

<mosaic_0001>
module attributes {stable_mosaic.version = 11 : i64} {
  func.func @subspace_fused_kernel(%arg0: i32, %arg1: memref<8x40xf32, #tpu.memory_space<vmem>>, %arg2: memref<320x128xf32, #tpu.memory_space<vmem>>, %arg3: memref<8x128xf32, #tpu.memory_space<vmem>>) attributes {dimension_semantics = [#tpu.dimension_semantics<parallel>], iteration_bounds = array<i64: 1>, scalar_prefetch = 0 : i64, scratch_operands = 0 : i64, tpu.core_type = #tpu.core_type<tc>, window_params = [{transform_indices = @transform_0, window_bounds = array<i64: 8, 40>}, {pipeline_mode = #tpu.pipeline_mode<synchronous>, transform_indices = @transform_1, window_bounds = array<i64: 320, 128>}, {transform_indices = @transform_2, window_bounds = array<i64: 8, 128>}]} {
    %c0 = arith.constant 0 : index
    %c0_0 = arith.constant 0 : index
    %0 = vector.load %arg1[%c0, %c0_0] : memref<8x40xf32, #tpu.memory_space<vmem>>, vector<8x40xf32>
    %c0_1 = arith.constant 0 : index
    %c0_2 = arith.constant 0 : index
    %1 = vector.load %arg2[%c0_1, %c0_2] : memref<320x128xf32, #tpu.memory_space<vmem>>, vector<40x128xf32>
    %c40 = arith.constant 40 : index
    %c0_3 = arith.constant 0 : index
    %2 = vector.load %arg2[%c40, %c0_3] : memref<320x128xf32, #tpu.memory_space<vmem>>, vector<1x128xf32>
    %cst = arith.constant dense<0.000000e+00> : vector<8x128xf32>
    %3 = tpu.matmul %0, %1, %cst {dimension_numbers = #tpu.dot_dimension_numbers<[1], [0], [0], [1], [0, 0, 1, 1], [], []>} : vector<8x40xf32>, vector<40x128xf32>, vector<8x128xf32> -> vector<8x128xf32>
    %4 = vector.broadcast %2 : vector<1x128xf32> to vector<8x128xf32>
    %5 = arith.addf %3, %4 : vector<8x128xf32>
    %6 = tpu.iota {dimensions = array<i32: 1>} : vector<8x128xi32>
    %c16_i32 = arith.constant 16 : i32
    %7 = vector.broadcast %c16_i32 : i32 to vector<8x128xi32>
    %8 = arith.cmpi slt, %6, %7 : vector<8x128xi32>
    %cst_4 = arith.constant 0.000000e+00 : f32
    %9 = vector.broadcast %cst_4 : f32 to vector<8x128xf32>
    %10 = arith.cmpf ogt, %5, %9 : vector<8x128xf32>
    %cst_5 = arith.constant 0.000000e+00 : f32
    %11 = vector.broadcast %cst_5 : f32 to vector<8x128xf32>
    %12 = arith.minimumf %5, %11 : vector<8x128xf32>
    %13 = math.exp %12 : vector<8x128xf32>
    %cst_6 = arith.constant 1.000000e+00 : f32
    %14 = vector.broadcast %cst_6 : f32 to vector<8x128xf32>
    %15 = arith.subf %13, %14 : vector<8x128xf32>
    %16 = arith.select %10, %5, %15 : vector<8x128xi1>, vector<8x128xf32>
    %cst_7 = arith.constant 0.000000e+00 : f32
    %17 = vector.broadcast %cst_7 : f32 to vector<8x128xf32>
    %18 = arith.cmpf ogt, %5, %17 : vector<8x128xf32>
    %cst_8 = arith.constant 0.00999999977 : f32
    %19 = vector.broadcast %cst_8 : f32 to vector<8x128xf32>
    %20 = arith.mulf %19, %5 : vector<8x128xf32>
    %21 = arith.select %18, %5, %20 : vector<8x128xi1>, vector<8x128xf32>
    %22 = arith.select %8, %16, %21 : vector<8x128xi1>, vector<8x128xf32>
    %c48 = arith.constant 48 : index
    %c0_9 = arith.constant 0 : index
    %23 = vector.load %arg2[%c48, %c0_9] : memref<320x128xf32, #tpu.memory_space<vmem>>, vector<128x128xf32>
    %c176 = arith.constant 176 : index
    %c0_10 = arith.constant 0 : index
    %24 = vector.load %arg2[%c176, %c0_10] : memref<320x128xf32, #tpu.memory_space<vmem>>, vector<1x128xf32>
    %cst_11 = arith.constant dense<0.000000e+00> : vector<8x128xf32>
    %25 = tpu.matmul %22, %23, %cst_11 {dimension_numbers = #tpu.dot_dimension_numbers<[1], [0], [0], [1], [0, 0, 1, 1], [], []>} : vector<8x128xf32>, vector<128x128xf32>, vector<8x128xf32> -> vector<8x128xf32>
    %26 = vector.broadcast %24 : vector<1x128xf32> to vector<8x128xf32>
    %27 = arith.addf %25, %26 : vector<8x128xf32>
    %c8_i32 = arith.constant 8 : i32
    %28 = vector.broadcast %c8_i32 : i32 to vector<8x128xi32>
    %29 = arith.cmpi slt, %6, %28 : vector<8x128xi32>
    %cst_12 = arith.constant 0.000000e+00 : f32
    %30 = vector.broadcast %cst_12 : f32 to vector<8x128xf32>
    %31 = arith.cmpf ogt, %27, %30 : vector<8x128xf32>
    %cst_13 = arith.constant 0.000000e+00 : f32
    %32 = vector.broadcast %cst_13 : f32 to vector<8x128xf32>
    %33 = arith.minimumf %27, %32 : vector<8x128xf32>
    %34 = math.exp %33 : vector<8x128xf32>
    %cst_14 = arith.constant 1.000000e+00 : f32
    %35 = vector.broadcast %cst_14 : f32 to vector<8x128xf32>
    %36 = arith.subf %34, %35 : vector<8x128xf32>
    %37 = arith.select %31, %27, %36 : vector<8x128xi1>, vector<8x128xf32>
    %cst_15 = arith.constant 0.000000e+00 : f32
    %38 = vector.broadcast %cst_15 : f32 to vector<8x128xf32>
    %39 = arith.cmpf ogt, %27, %38 : vector<8x128xf32>
    %cst_16 = arith.constant 0.00999999977 : f32
    %40 = vector.broadcast %cst_16 : f32 to vector<8x128xf32>
    %41 = arith.mulf %40, %27 : vector<8x128xf32>
    %42 = arith.select %39, %27, %41 : vector<8x128xi1>, vector<8x128xf32>
    %43 = arith.select %29, %37, %42 : vector<8x128xi1>, vector<8x128xf32>
    %c184 = arith.constant 184 : index
    %c0_17 = arith.constant 0 : index
    %44 = vector.load %arg2[%c184, %c0_17] : memref<320x128xf32, #tpu.memory_space<vmem>>, vector<128x128xf32>
    %c312 = arith.constant 312 : index
    %c0_18 = arith.constant 0 : index
    %45 = vector.load %arg2[%c312, %c0_18] : memref<320x128xf32, #tpu.memory_space<vmem>>, vector<1x128xf32>
    %cst_19 = arith.constant dense<0.000000e+00> : vector<8x128xf32>
    %46 = tpu.matmul %43, %44, %cst_19 {dimension_numbers = #tpu.dot_dimension_numbers<[1], [0], [0], [1], [0, 0, 1, 1], [], []>} : vector<8x128xf32>, vector<128x128xf32>, vector<8x128xf32> -> vector<8x128xf32>
    %47 = vector.broadcast %45 : vector<1x128xf32> to vector<8x128xf32>
    %48 = arith.addf %46, %47 : vector<8x128xf32>
    %c2_i32 = arith.constant 2 : i32
    %49 = vector.broadcast %c2_i32 : i32 to vector<8x128xi32>
    %50 = arith.cmpi slt, %6, %49 : vector<8x128xi32>
    %cst_20 = arith.constant 1.000000e-01 : f32
    %51 = vector.broadcast %cst_20 : f32 to vector<8x128xf32>
    %52 = arith.mulf %48, %51 : vector<8x128xf32>
    %cst_21 = arith.constant 0.000000e+00 : f32
    %53 = vector.broadcast %cst_21 : f32 to vector<8x128xf32>
    %54 = arith.cmpf ogt, %52, %53 : vector<8x128xf32>
    %cst_22 = arith.constant 1.000000e+00 : f32
    %55 = vector.broadcast %cst_22 : f32 to vector<8x128xf32>
    %56 = arith.addf %52, %55 : vector<8x128xf32>
    %cst_23 = arith.constant 0.000000e+00 : f32
    %57 = vector.broadcast %cst_23 : f32 to vector<8x128xf32>
    %58 = arith.minimumf %52, %57 : vector<8x128xf32>
    %59 = math.exp %58 : vector<8x128xf32>
    %60 = arith.select %54, %56, %59 : vector<8x128xi1>, vector<8x128xf32>
    %61 = arith.select %50, %48, %60 : vector<8x128xi1>, vector<8x128xf32>
    %c0_24 = arith.constant 0 : index
    %c0_25 = arith.constant 0 : index
    %62 = vector.load %arg3[%c0_24, %c0_25] : memref<8x128xf32, #tpu.memory_space<vmem>>, vector<8x128xf32>
    tpu.vector_store %arg3[%c0_24, %c0_25], %61 {strides = array<i32>} : memref<8x128xf32, #tpu.memory_space<vmem>>, vector<8x128xf32>,
    return
  }
  func.func @transform_0(%arg0: i32) -> (i32, i32) {
    %c0_i32 = arith.constant 0 : i32
    %c0_i32_0 = arith.constant 0 : i32
    return %arg0, %c0_i32 : i32, i32
  }
  func.func @transform_1(%arg0: i32) -> (i32, i32) {
    %c0_i32 = arith.constant 0 : i32
    %c0_i32_0 = arith.constant 0 : i32
    %c0_i32_1 = arith.constant 0 : i32
    return %c0_i32, %c0_i32_0 : i32, i32
  }
  func.func @transform_2(%arg0: i32) -> (i32, i32) {
    %c0_i32 = arith.constant 0 : i32
    %c0_i32_0 = arith.constant 0 : i32
    return %arg0, %c0_i32 : i32, i32
  }
}

</mosaic_0001>

<llo_original>
// kernel: subspace_predictor_forward_batched.1
$region0: #{subspace_predictor_forward_batched.1}
  #allocation0 [shape = 'u32[]', space=smem, size = 0x4, offset = 0x4, fixed_abs, tag = 'smem constant byte address 0x4 - core index']
  #allocation1 [shape = 'u32[144,128]{1,0:T(1,128)}', space=vmem, size = 0x12000, scoped, tag = 'internal scratch']
  %s0 = inlined_call_operand.vmem [shape: f32[8,40], index: 0, kind: input, shape index: {}]
  %s1 = inlined_call_operand.hbm [shape: f32[320,128], index: 1, kind: input, shape index: {}]
  %s2 = inlined_call_operand.vmem [shape: f32[8,128], index: 2, kind: output, shape index: {}]
  %s3 = sld [smem:[#allocation0]]
  $region22: #{subspace_predictor_forward_batched.1} parent=0
    _
  %s5 = ssub.s32 1, %s3
  %s6 = scalar_select 0, %s5, %s3
  $region1: #{subspace_predictor_forward_batched.1} parent=0
    #allocation2 [shape = 'u8[163840]{0}', space=vmem, size = 0x28000, scoped, tag = 'input window, operand 1, single buffered']
    #allocation3 [shape = 's32[1]{0}', space=sflag, size = 0x4, scoped, tag = 'scoped memory for subspace_predictor_forward_batched.1']
    %7 = vsyncpa [#allocation3], 0
    // Predicated region
    $region2: #{subspace_predictor_forward_batched.1} parent=1 // pred_check
      _
    $region3: #{subspace_predictor_forward_batched.1} parent=1 // pred_check_branch
      %9 = sbr.rel (0) target = $region5
    $region4: #{subspace_predictor_forward_batched.1} parent=1 // pred_region
      _
    $region5: #{subspace_predictor_forward_batched.1} parent=1 // pred_fallthru
      _
    // Predicated region
    $region6: #{subspace_predictor_forward_batched.1} parent=1 // pred_check
      _
    $region7: #{subspace_predictor_forward_batched.1} parent=1 // pred_check_branch
      %11 = sbr.rel (0) target = $region9
    $region8: #{subspace_predictor_forward_batched.1} parent=1 // pred_region
      %s13 = ssub.s32 5120, 5120
      %14 = vsyncadd [#allocation3], %s13
      %s15 = sshll.u32 [#allocation2], 4
      %s16 = int_to_ptr.vmem [resolvable:$true] %s15
      %21 = dma.hbm_to_vmem [thread:$0]  %s1, 5120, %s16, [#allocation3], 128, 128, 8
    $region9: #{subspace_predictor_forward_batched.1} parent=1 // pred_fallthru
      _
    // Predicated region
    $region10: #{subspace_predictor_forward_batched.1} parent=1 // pred_check
      _
    $region11: #{subspace_predictor_forward_batched.1} parent=1 // pred_check_branch
      %23 = sbr.rel (0) target = $region13
    $region12: #{subspace_predictor_forward_batched.1} parent=1 // pred_region
      %24 = dma.done [#allocation3], 5120
    $region13: #{subspace_predictor_forward_batched.1} parent=1 // pred_fallthru
      _
    %v25 = vld [vmem:[%s0] sm:$0xff]
    %v26 = vld [vmem:[#allocation2] sm:$0xff]
    %v27 = vld [vmem:[#allocation2 + $0x8] sm:$0xff]
    %v28 = vld [vmem:[#allocation2 + $0x10] sm:$0xff]
    %v29 = vld [vmem:[#allocation2 + $0x18] sm:$0xff]
    %v30 = vld [vmem:[#allocation2 + $0x20] sm:$0xff]
    %v31 = vld [vmem:[#allocation2 + $0x28] sm:$0x1]
    %v32 = vlaneseq
    %v33 = vshrl.u32 %v32, 7
    %v34 = vsub.s32 0, %v33
    %v35 = vrot.slane %v31, %v34
    %vm36 = vcmask 326656
    %v38 = vsel %vm36, %v25, 0
    %40 = vmatprep.subr.mxu0 0.0
    %41 = vmatpush1.msra.mxu0 %v26
    %42 = vmatprep.subr.mxu0 0.0
    %43 = vmatpush1.msra.mxu0 %v27
    %44 = vmatprep.subr.mxu0 0.0
    %45 = vmatpush1.msra.mxu0 %v28
    %46 = vmatprep.subr.mxu0 0.0
    %47 = vmatpush1.msra.mxu0 %v29
    %48 = vmatprep.subr.mxu0 0.0
    %49 = vmatpush1.msra.mxu0 %v30
    %50 = vmatprep.subr.mxu0 0.0
    %51 = vmatpush1.msra.mxu0 0.0
    %52 = vmatprep.subr.mxu0 0.0
    %53 = vmatpush1.msra.mxu0 0.0
    %54 = vmatprep.subr.mxu0 0.0
    %55 = vmatpush1.msra.mxu0 0.0
    %56 = vmatprep.subr.mxu0 0.0
    %57 = vmatpush1.msra.mxu0 0.0
    %58 = vmatprep.subr.mxu0 0.0
    %59 = vmatpush1.msra.mxu0 0.0
    %60 = vmatprep.subr.mxu0 0.0
    %61 = vmatpush1.msra.mxu0 0.0
    %62 = vmatprep.subr.mxu0 0.0
    %63 = vmatpush1.msra.mxu0 0.0
    %64 = vmatprep.subr.mxu0 0.0
    %65 = vmatpush1.msra.mxu0 0.0
    %66 = vmatprep.subr.mxu0 0.0
    %67 = vmatpush1.msra.mxu0 0.0
    %68 = vmatprep.subr.mxu0 0.0
    %69 = vmatpush1.msra.mxu0 0.0
    %70 = vmatprep.subr.mxu0 0.0
    %71 = vmatpush1.msra.mxu0 0.0
    %72 = vmatprep.subr.mxu0 0.0
    %73 = vmatpush1.msra.mxu0 0.0
    %74 = vmatprep.subr.mxu0 0.0
    %75 = vmatpush1.msra.mxu0 0.0
    %76 = vmatprep.subr.mxu0 0.0
    %77 = vmatpush1.msra.mxu0 0.0
    %78 = vmatprep.subr.mxu0 0.0
    %79 = vmatpush1.msra.mxu0 0.0
    %80 = vmatprep.subr.mxu0 0.0
    %81 = vmatpush1.msra.mxu0 0.0
    %82 = vmatprep.subr.mxu0 0.0
    %83 = vmatpush1.msra.mxu0 0.0
    %84 = vmatprep.subr.mxu0 0.0
    %85 = vmatpush1.msra.mxu0 0.0
    %86 = vmatprep.subr.mxu0 0.0
    %87 = vmatpush1.msra.mxu0 0.0
    %88 = vmatprep.subr.mxu0 0.0
    %89 = vmatpush1.msra.mxu0 0.0
    %90 = vmatprep.subr.mxu0 0.0
    %91 = vmatpush1.msra.mxu0 0.0
    %92 = vmatprep.subr.mxu0 0.0
    %93 = vmatpush1.msra.mxu0 0.0
    %94 = vmatprep.subr.mxu0 0.0
    %95 = vmatpush1.msra.mxu0 0.0
    %96 = vmatprep.subr.mxu0 0.0
    %97 = vmatpush1.msra.mxu0 0.0
    %98 = vmatprep.subr.mxu0 0.0
    %99 = vmatpush1.msra.mxu0 0.0
    %100 = vmatprep.subr.mxu0 0.0
    %101 = vmatpush1.msra.mxu0 0.0
    %102 = vmatprep.subr.mxu0 0.0
    %103 = vmatpush1.msra.mxu0 0.0
    %104 = vmatprep.mubr.f32.mxu0 0.0
    %105 = vmatmul.mubr.f32.gmra.mrb[0].mxu0 %v38
    %v106 = vpop.f32.mrb[0].mxu0
    %v107 = vadd.f32 %v35, %v106
    %v108 = vpop.f32.mrb[0].mxu0
    %109 = vdwg.mxu0
    %v110 = vlaneseq
    %v111 = vand.u32 %v110, 127
    %vm112 = vcmp.lt.s32.totalorder %v111, 16
    %vm113 = vcmp.gt.f32.partialorder %v107, 0.0
    %v114 = vmin.f32 %v107, 0.0
    %v115 = vmul.f32 %v114, 1.442695
    %v116 = vpow.pop %v115
    %v117 = vsub.f32 %v116, 1.0
    %v118 = vsel %vm113, %v107, %v117
    %v119 = vmul.f32 %v107, 0.01
    %v120 = vsel %vm113, %v107, %v119
    %v121 = vsel %vm112, %v118, %v120
    %v122 = vld [vmem:[#allocation2 + $0x30] sm:$0xff]
    %v123 = vld [vmem:[#allocation2 + $0x38] sm:$0xff]
    %v124 = vld [vmem:[#allocation2 + $0x40] sm:$0xff]
    %v125 = vld [vmem:[#allocation2 + $0x48] sm:$0xff]
    %v126 = vld [vmem:[#allocation2 + $0x50] sm:$0xff]
    %v127 = vld [vmem:[#allocation2 + $0x58] sm:$0xff]
    %v128 = vld [vmem:[#allocation2 + $0x60] sm:$0xff]
    %v129 = vld [vmem:[#allocation2 + $0x68] sm:$0xff]
    %v130 = vld [vmem:[#allocation2 + $0x70] sm:$0xff]
    %v131 = vld [vmem:[#allocation2 + $0x78] sm:$0xff]
    %v132 = vld [vmem:[#allocation2 + $0x80] sm:$0xff]
    %v133 = vld [vmem:[#allocation2 + $0x88] sm:$0xff]
    %v134 = vld [vmem:[#allocation2 + $0x90] sm:$0xff]
    %v135 = vld [vmem:[#allocation2 + $0x98] sm:$0xff]
    %v136 = vld [vmem:[#allocation2 + $0xa0] sm:$0xff]
    %v137 = vld [vmem:[#allocation2 + $0xa8] sm:$0xff]
    %v138 = vld [vmem:[#allocation2 + $0xb0] sm:$0x1]
    %v139 = vlaneseq
    %v140 = vshrl.u32 %v139, 7
    %v141 = vsub.s32 0, %v140
    %v142 = vrot.slane %v138, %v141
    %143 = vmatprep.subr.mxu0 0.0
    %144 = vmatpush1.msra.mxu0 %v122
    %145 = vmatprep.subr.mxu0 0.0
    %146 = vmatpush1.msra.mxu0 %v123
    %147 = vmatprep.subr.mxu0 0.0
    %148 = vmatpush1.msra.mxu0 %v124
    %149 = vmatprep.subr.mxu0 0.0
    %150 = vmatpush1.msra.mxu0 %v125
    %151 = vmatprep.subr.mxu0 0.0
    %152 = vmatpush1.msra.mxu0 %v126
    %153 = vmatprep.subr.mxu0 0.0
    %154 = vmatpush1.msra.mxu0 %v127
    %155 = vmatprep.subr.mxu0 0.0
    %156 = vmatpush1.msra.mxu0 %v128
    %157 = vmatprep.subr.mxu0 0.0
    %158 = vmatpush1.msra.mxu0 %v129
    %159 = vmatprep.subr.mxu0 0.0
    %160 = vmatpush1.msra.mxu0 %v130
    %161 = vmatprep.subr.mxu0 0.0
    %162 = vmatpush1.msra.mxu0 %v131
    %163 = vmatprep.subr.mxu0 0.0
    %164 = vmatpush1.msra.mxu0 %v132
    %165 = vmatprep.subr.mxu0 0.0
    %166 = vmatpush1.msra.mxu0 %v133
    %167 = vmatprep.subr.mxu0 0.0
    %168 = vmatpush1.msra.mxu0 %v134
    %169 = vmatprep.subr.mxu0 0.0
    %170 = vmatpush1.msra.mxu0 %v135
    %171 = vmatprep.subr.mxu0 0.0
    %172 = vmatpush1.msra.mxu0 %v136
    %173 = vmatprep.subr.mxu0 0.0
    %174 = vmatpush1.msra.mxu0 %v137
    %175 = vmatprep.subr.mxu0 0.0
    %176 = vmatpush1.msra.mxu0 0.0
    %177 = vmatprep.subr.mxu0 0.0
    %178 = vmatpush1.msra.mxu0 0.0
    %179 = vmatprep.subr.mxu0 0.0
    %180 = vmatpush1.msra.mxu0 0.0
    %181 = vmatprep.subr.mxu0 0.0
    %182 = vmatpush1.msra.mxu0 0.0
    %183 = vmatprep.subr.mxu0 0.0
    %184 = vmatpush1.msra.mxu0 0.0
    %185 = vmatprep.subr.mxu0 0.0
    %186 = vmatpush1.msra.mxu0 0.0
    %187 = vmatprep.subr.mxu0 0.0
    %188 = vmatpush1.msra.mxu0 0.0
    %189 = vmatprep.subr.mxu0 0.0
    %190 = vmatpush1.msra.mxu0 0.0
    %191 = vmatprep.subr.mxu0 0.0
    %192 = vmatpush1.msra.mxu0 0.0
    %193 = vmatprep.subr.mxu0 0.0
    %194 = vmatpush1.msra.mxu0 0.0
    %195 = vmatprep.subr.mxu0 0.0
    %196 = vmatpush1.msra.mxu0 0.0
    %197 = vmatprep.subr.mxu0 0.0
    %198 = vmatpush1.msra.mxu0 0.0
    %199 = vmatprep.subr.mxu0 0.0
    %200 = vmatpush1.msra.mxu0 0.0
    %201 = vmatprep.subr.mxu0 0.0
    %202 = vmatpush1.msra.mxu0 0.0
    %203 = vmatprep.subr.mxu0 0.0
    %204 = vmatpush1.msra.mxu0 0.0
    %205 = vmatprep.subr.mxu0 0.0
    %206 = vmatpush1.msra.mxu0 0.0
    %207 = vmatprep.mubr.f32.mxu0 0.0
    %208 = vmatmul.mubr.f32.gmra.mrb[0].mxu0 %v121
    %v209 = vpop.f32.mrb[0].mxu0
    %v210 = vadd.f32 %v142, %v209
    %v211 = vpop.f32.mrb[0].mxu0
    %212 = vdwg.mxu0
    %vm213 = vcmp.lt.s32.totalorder %v111, 8
    %vm214 = vcmp.gt.f32.partialorder %v210, 0.0
    %v215 = vmin.f32 %v210, 0.0
    %v216 = vmul.f32 %v215, 1.442695
    %v217 = vpow.pop %v216
    %v218 = vsub.f32 %v217, 1.0
    %v219 = vsel %vm214, %v210, %v218
    %v220 = vmul.f32 %v210, 0.01
    %v221 = vsel %vm214, %v210, %v220
    %v222 = vsel %vm213, %v219, %v221
    %v223 = vld [vmem:[#allocation2 + $0xb8] sm:$0xff]
    %v224 = vld [vmem:[#allocation2 + $0xc0] sm:$0xff]
    %v225 = vld [vmem:[#allocation2 + $0xc8] sm:$0xff]
    %v226 = vld [vmem:[#allocation2 + $0xd0] sm:$0xff]
    %v227 = vld [vmem:[#allocation2 + $0xd8] sm:$0xff]
    %v228 = vld [vmem:[#allocation2 + $0xe0] sm:$0xff]
    %v229 = vld [vmem:[#allocation2 + $0xe8] sm:$0xff]
    %v230 = vld [vmem:[#allocation2 + $0xf0] sm:$0xff]
    %v231 = vld [vmem:[#allocation2 + $0xf8] sm:$0xff]
    %v232 = vld [vmem:[#allocation2 + $0x100] sm:$0xff]
    %v233 = vld [vmem:[#allocation2 + $0x108] sm:$0xff]
    %v234 = vld [vmem:[#allocation2 + $0x110] sm:$0xff]
    %v235 = vld [vmem:[#allocation2 + $0x118] sm:$0xff]
    %v236 = vld [vmem:[#allocation2 + $0x120] sm:$0xff]
    %v237 = vld [vmem:[#allocation2 + $0x128] sm:$0xff]
    %v238 = vld [vmem:[#allocation2 + $0x130] sm:$0xff]
    %v239 = vld [vmem:[#allocation2 + $0x138] sm:$0x1]
    %v240 = vlaneseq
    %v241 = vshrl.u32 %v240, 7
    %v242 = vsub.s32 0, %v241
    %v243 = vrot.slane %v239, %v242
    %244 = vmatprep.subr.mxu0 0.0
    %245 = vmatpush1.msra.mxu0 %v223
    %246 = vmatprep.subr.mxu0 0.0
    %247 = vmatpush1.msra.mxu0 %v224
    %248 = vmatprep.subr.mxu0 0.0
    %249 = vmatpush1.msra.mxu0 %v225
    %250 = vmatprep.subr.mxu0 0.0
    %251 = vmatpush1.msra.mxu0 %v226
    %252 = vmatprep.subr.mxu0 0.0
    %253 = vmatpush1.msra.mxu0 %v227
    %254 = vmatprep.subr.mxu0 0.0
    %255 = vmatpush1.msra.mxu0 %v228
    %256 = vmatprep.subr.mxu0 0.0
    %257 = vmatpush1.msra.mxu0 %v229
    %258 = vmatprep.subr.mxu0 0.0
    %259 = vmatpush1.msra.mxu0 %v230
    %260 = vmatprep.subr.mxu0 0.0
    %261 = vmatpush1.msra.mxu0 %v231
    %262 = vmatprep.subr.mxu0 0.0
    %263 = vmatpush1.msra.mxu0 %v232
    %264 = vmatprep.subr.mxu0 0.0
    %265 = vmatpush1.msra.mxu0 %v233
    %266 = vmatprep.subr.mxu0 0.0
    %267 = vmatpush1.msra.mxu0 %v234
    %268 = vmatprep.subr.mxu0 0.0
    %269 = vmatpush1.msra.mxu0 %v235
    %270 = vmatprep.subr.mxu0 0.0
    %271 = vmatpush1.msra.mxu0 %v236
    %272 = vmatprep.subr.mxu0 0.0
    %273 = vmatpush1.msra.mxu0 %v237
    %274 = vmatprep.subr.mxu0 0.0
    %275 = vmatpush1.msra.mxu0 %v238
    %276 = vmatprep.subr.mxu0 0.0
    %277 = vmatpush1.msra.mxu0 0.0
    %278 = vmatprep.subr.mxu0 0.0
    %279 = vmatpush1.msra.mxu0 0.0
    %280 = vmatprep.subr.mxu0 0.0
    %281 = vmatpush1.msra.mxu0 0.0
    %282 = vmatprep.subr.mxu0 0.0
    %283 = vmatpush1.msra.mxu0 0.0
    %284 = vmatprep.subr.mxu0 0.0
    %285 = vmatpush1.msra.mxu0 0.0
    %286 = vmatprep.subr.mxu0 0.0
    %287 = vmatpush1.msra.mxu0 0.0
    %288 = vmatprep.subr.mxu0 0.0
    %289 = vmatpush1.msra.mxu0 0.0
    %290 = vmatprep.subr.mxu0 0.0
    %291 = vmatpush1.msra.mxu0 0.0
    %292 = vmatprep.subr.mxu0 0.0
    %293 = vmatpush1.msra.mxu0 0.0
    %294 = vmatprep.subr.mxu0 0.0
    %295 = vmatpush1.msra.mxu0 0.0
    %296 = vmatprep.subr.mxu0 0.0
    %297 = vmatpush1.msra.mxu0 0.0
    %298 = vmatprep.subr.mxu0 0.0
    %299 = vmatpush1.msra.mxu0 0.0
    %300 = vmatprep.subr.mxu0 0.0
    %301 = vmatpush1.msra.mxu0 0.0
    %302 = vmatprep.subr.mxu0 0.0
    %303 = vmatpush1.msra.mxu0 0.0
    %304 = vmatprep.subr.mxu0 0.0
    %305 = vmatpush1.msra.mxu0 0.0
    %306 = vmatprep.subr.mxu0 0.0
    %307 = vmatpush1.msra.mxu0 0.0
    %308 = vmatprep.mubr.f32.mxu0 0.0
    %309 = vmatmul.mubr.f32.gmra.mrb[0].mxu0 %v222
    %v310 = vpop.f32.mrb[0].mxu0
    %v311 = vadd.f32 %v243, %v310
    %v312 = vpop.f32.mrb[0].mxu0
    %313 = vdwg.mxu0
    %vm314 = vcmp.lt.s32.totalorder %v111, 2
    %v315 = vmul.f32 %v311, 0.1
    %vm316 = vcmp.gt.f32.partialorder %v315, 0.0
    %v317 = vadd.f32 %v315, 1.0
    %v318 = vmin.f32 %v315, 0.0
    %v319 = vmul.f32 %v318, 1.442695
    %v320 = vpow.pop %v319
    %v321 = vsel %vm316, %v317, %v320
    %v322 = vsel %vm314, %v311, %v321
    %323 = vst [vmem:[%s2] sm:$0xff] %v322
    // Predicated region
    $region14: #{subspace_predictor_forward_batched.1} parent=1 // pred_check
      _
    $region15: #{subspace_predictor_forward_batched.1} parent=1 // pred_check_branch
      %325 = sbr.rel (0) target = $region17
    $region16: #{subspace_predictor_forward_batched.1} parent=1 // pred_region
      _
    $region17: #{subspace_predictor_forward_batched.1} parent=1 // pred_fallthru
      _
    // Predicated region
    $region18: #{subspace_predictor_forward_batched.1} parent=1 // pred_check
      _
    $region19: #{subspace_predictor_forward_batched.1} parent=1 // pred_check_branch
      %327 = sbr.rel (0) target = $region21
    $region20: #{subspace_predictor_forward_batched.1} parent=1 // pred_region
      _
    $region21: #{subspace_predictor_forward_batched.1} parent=1 // pred_fallthru
      _
    %328 = vsyncpa [#allocation3], 1

</llo_original>
